<compile_context>
chip_gen: v6e
topology: v6e:2x2x1
jax: 0.10.0
libtpu: 0.0.40
codegen_flags: <defaults>
</compile_context>

<pallas_src>
import jax
import jax.numpy as jnp
from jax.experimental import pallas as pl
from jax.experimental.pallas import tpu as pltpu


def _round_up(x, m):
    return ((x + m - 1) // m) * m


def _skipgram_kernel(emb_ref, w_ref, bias_ref, out_ref):
    # (bm, D) x (tn, D) contracted over D  ==  emb @ W.T.  The PyTorch (V, D)
    # weight layout is consumed directly (no host-side transpose); the MXU
    # handles the transposed RHS natively.  bf16 operands, f32 accumulation.
    logits = jax.lax.dot_general(
        emb_ref[...],
        w_ref[...],
        dimension_numbers=(((1,), (1,)), ((), ())),
        preferred_element_type=jnp.float32,
    )
    out_ref[...] = (logits + bias_ref[...]).astype(out_ref.dtype)


def skipgram_forward(inputs, embedding_table, linear_weight, linear_bias,
                     *, max_bm=256, max_tn=4096):
    """SkipGramModel forward.

    Args:
      inputs:          (B,) int token ids.
      embedding_table: (V, D) float32.
      linear_weight:   (V, D) float32  (PyTorch nn.Linear weight layout).
      linear_bias:     (V,)   float32.

    Returns:
      (B, V) float32 logits.
    """
    B = inputs.shape[0]
    V, D = embedding_table.shape

    # ---- Host-side prep (cheap, one-time) --------------------------------
    # Embedding lookup in the wrapper (perf-review recommendation): the
    # (B, D) activation is tiny and the BlockSpec pipeline double-buffers it.
    emb = jnp.take(embedding_table, inputs.astype(jnp.int32), axis=0)  # (B, D)

    bm = min(max_bm, _round_up(B, 8))          # sublane-dense batch tile
    B_pad = _round_up(B, bm)
    D_pad = _round_up(D, 128)                  # lane-dense contraction dim
    tn = min(max_tn, _round_up(V, 128))        # lane-dense vocab tile
    V_pad = _round_up(V, tn)

    # Zero padding is exact: padded D lanes contribute 0 to the contraction,
    # padded vocab rows / batch rows are sliced off below.
    emb = jnp.pad(emb, ((0, B_pad - B), (0, D_pad - D))).astype(jnp.bfloat16)
    w = jnp.pad(linear_weight,
                ((0, V_pad - V), (0, D_pad - D))).astype(jnp.bfloat16)
    bias = jnp.pad(linear_bias, (0, V_pad - V)).reshape(1, V_pad)
    bias = bias.astype(jnp.float32)

    grid = (V_pad // tn, B_pad // bm)          # vocab OUTER, batch INNER

    grid_spec = pltpu.PrefetchScalarGridSpec(
        num_scalar_prefetch=0,
        grid=grid,
        in_specs=[
            # Activations: depend only on the inner batch index.
            pl.BlockSpec((bm, D_pad), lambda j, i: (i, 0)),
            # Weight tile: depends only on the outer vocab index -> stays
            # resident in VMEM across every inner batch step.
            pl.BlockSpec((tn, D_pad), lambda j, i: (j, 0)),
            # Bias tile.
            pl.BlockSpec((1, tn), lambda j, i: (0, j)),
        ],
        out_specs=pl.BlockSpec((bm, tn), lambda j, i: (i, j)),
    )

    out = pl.pallas_call(
        _skipgram_kernel,
        out_shape=jax.ShapeDtypeStruct((B_pad, V_pad), jnp.float32),
        grid_spec=grid_spec,
        compiler_params=pltpu.CompilerParams(
            dimension_semantics=("parallel", "arbitrary"),
            vmem_limit_bytes=48 * 1024 * 1024,
        ),
    )(emb, w, bias)

    return out[:B, :V]


def reference_forward(inputs, embedding_table, linear_weight, linear_bias):
    x = embedding_table[inputs]                  # (B, D)   f32 reference
    return x @ linear_weight.T + linear_bias     # (B, V)


if __name__ == "__main__":
    # Small shapes consistent with the module: vocab=256, embedding_dim=128,
    # batch=8.
    vocab_size = 256
    embedding_dim = 128
    batch = 8

    key = jax.random.PRNGKey(0)
    k_emb, k_w, k_b, k_ids = jax.random.split(key, 4)

    # Deterministic synthetic parameter init (not a checkpoint load).
    embedding_table = jax.random.normal(
        k_emb, (vocab_size, embedding_dim), dtype=jnp.float32
    )
    bound = 1.0 / (embedding_dim ** 0.5)
    linear_weight = jax.random.uniform(
        k_w, (vocab_size, embedding_dim), dtype=jnp.float32,
        minval=-bound, maxval=bound,
    )
    linear_bias = jax.random.uniform(
        k_b, (vocab_size,), dtype=jnp.float32, minval=-bound, maxval=bound
    )
    inputs = jax.random.randint(k_ids, (batch,), 0, vocab_size, dtype=jnp.int32)

    out = skipgram_forward(inputs, embedding_table, linear_weight, linear_bias)
    out = jax.block_until_ready(out)

    ref = reference_forward(inputs, embedding_table, linear_weight, linear_bias)
    assert out.shape == (batch, vocab_size)
    # Tolerance sized for bf16 operand streams with f32 accumulation.
    assert jnp.allclose(out, ref, atol=2e-2, rtol=2e-2), "mismatch vs reference"

    print("KERNEL_OK")
</pallas_src>

<mosaic_0001>
module attributes {stable_mosaic.version = 11 : i64} {
  func.func @_skipgram_kernel(%arg0: i32, %arg1: i32, %arg2: memref<8x128xbf16, #tpu.memory_space<vmem>>, %arg3: memref<256x128xbf16, #tpu.memory_space<vmem>>, %arg4: memref<1x256xf32, #tpu.memory_space<vmem>>, %arg5: memref<8x256xf32, #tpu.memory_space<vmem>>) attributes {dimension_semantics = [#tpu.dimension_semantics<parallel>, #tpu.dimension_semantics<arbitrary>], iteration_bounds = array<i64: 1, 1>, scalar_prefetch = 0 : i64, scratch_operands = 0 : i64, tpu.core_type = #tpu.core_type<tc>, window_params = [{transform_indices = @transform_0, window_bounds = array<i64: 8, 128>}, {transform_indices = @transform_1, window_bounds = array<i64: 256, 128>}, {transform_indices = @transform_2, window_bounds = array<i64: 1, 256>}, {transform_indices = @transform_3, window_bounds = array<i64: 8, 256>}]} {
    %c0 = arith.constant 0 : index
    %c0_0 = arith.constant 0 : index
    %0 = vector.load %arg2[%c0, %c0_0] : memref<8x128xbf16, #tpu.memory_space<vmem>>, vector<8x128xbf16>
    %c0_1 = arith.constant 0 : index
    %c0_2 = arith.constant 0 : index
    %1 = vector.load %arg3[%c0_1, %c0_2] : memref<256x128xbf16, #tpu.memory_space<vmem>>, vector<256x128xbf16>
    %cst = arith.constant dense<0.000000e+00> : vector<8x256xf32>
    %2 = tpu.matmul %0, %1, %cst {dimension_numbers = #tpu.dot_dimension_numbers<[1], [1], [0], [0], [0, 0, 1, 0], [], []>} : vector<8x128xbf16>, vector<256x128xbf16>, vector<8x256xf32> -> vector<8x256xf32>
    %c0_3 = arith.constant 0 : index
    %c0_4 = arith.constant 0 : index
    %3 = vector.load %arg4[%c0_3, %c0_4] : memref<1x256xf32, #tpu.memory_space<vmem>>, vector<1x256xf32>
    %4 = vector.broadcast %3 : vector<1x256xf32> to vector<8x256xf32>
    %5 = arith.addf %2, %4 : vector<8x256xf32>
    %c0_5 = arith.constant 0 : index
    %c0_6 = arith.constant 0 : index
    %6 = vector.load %arg5[%c0_5, %c0_6] : memref<8x256xf32, #tpu.memory_space<vmem>>, vector<8x256xf32>
    tpu.vector_store %arg5[%c0_5, %c0_6], %5 {strides = array<i32>} : memref<8x256xf32, #tpu.memory_space<vmem>>, vector<8x256xf32>,
    return
  }
  func.func @transform_0(%arg0: i32, %arg1: i32) -> (i32, i32) {
    %c0_i32 = arith.constant 0 : i32
    %c0_i32_0 = arith.constant 0 : i32
    return %arg1, %c0_i32 : i32, i32
  }
  func.func @transform_1(%arg0: i32, %arg1: i32) -> (i32, i32) {
    %c0_i32 = arith.constant 0 : i32
    %c0_i32_0 = arith.constant 0 : i32
    return %arg0, %c0_i32 : i32, i32
  }
  func.func @transform_2(%arg0: i32, %arg1: i32) -> (i32, i32) {
    %c0_i32 = arith.constant 0 : i32
    %c0_i32_0 = arith.constant 0 : i32
    return %c0_i32, %arg0 : i32, i32
  }
  func.func @transform_3(%arg0: i32, %arg1: i32) -> (i32, i32) {
    %c0_i32 = arith.constant 0 : i32
    return %arg1, %arg0 : i32, i32
  }
}

</mosaic_0001>

<llo_original>
// kernel: tpu_custom_call.1
$region0: #{tpu_custom_call.1}
  #allocation0 [shape = 'u32[]', space=smem, size = 0x4, offset = 0x4, fixed_abs, tag = 'smem constant byte address 0x4 - core index']
  #allocation1 [shape = 'u32[144,128]{1,0:T(1,128)}', space=vmem, size = 0x12000, scoped, tag = 'internal scratch']
  %s0 = inlined_call_operand.hbm [shape: bf16[8,128], index: 0, kind: input, shape index: {}]
  %s1 = inlined_call_operand.hbm [shape: bf16[256,128], index: 1, kind: input, shape index: {}]
  %s2 = inlined_call_operand.vmem [shape: f32[1,256], index: 2, kind: input, shape index: {}]
  %s3 = inlined_call_operand.hbm [shape: f32[8,256], index: 3, kind: output, shape index: {}]
  %s4 = sld [smem:[#allocation0]]
  $region30: #{tpu_custom_call.1} parent=0
    _
  %s6 = ssub.s32 1, %s4
  %s7 = scalar_select 0, %s6, %s4
  $region1: #{tpu_custom_call.1} parent=0
    #allocation2 [shape = 'u8[2048]{0}', space=vmem, size = 0x800, scoped, tag = 'input window, operand 0, single buffered']
    #allocation3 [shape = 's32[1]{0}', space=sflag, size = 0x4, scoped, tag = 'scoped memory for tpu_custom_call.1']
    #allocation4 [shape = 's32[1]{0}', space=sflag, size = 0x4, scoped, tag = 'scoped memory for tpu_custom_call.1']
    #allocation5 [shape = 'u8[65536]{0}', space=vmem, size = 0x10000, scoped, tag = 'input window, operand 1, single buffered']
    #allocation6 [shape = 's32[1]{0}', space=sflag, size = 0x4, scoped, tag = 'scoped memory for tpu_custom_call.1']
    #allocation7 [shape = 'u8[8192]{0}', space=vmem, size = 0x2000, scoped, tag = 'output window, operand 0, single buffered']
    %8 = vsyncpa [#allocation3], 0
    %9 = vsyncpa [#allocation6], 0
    %10 = vsyncpa [#allocation4], 0
    // Predicated region
    $region2: #{tpu_custom_call.1} parent=1 // pred_check
      _
    $region3: #{tpu_custom_call.1} parent=1 // pred_check_branch
      %12 = sbr.rel (0) target = $region5
    $region4: #{tpu_custom_call.1} parent=1 // pred_region
      %s14 = ssub.s32 64, 64
      %15 = vsyncadd [#allocation3], %s14
      %s17 = sshll.u32 [#allocation2], 4
      %s18 = int_to_ptr.vmem [resolvable:$true] %s17
      %20 = dma.hbm_to_vmem [thread:$0]  %s0, 64, %s18, [#allocation3]
    $region5: #{tpu_custom_call.1} parent=1 // pred_fallthru
      _
    // Predicated region
    $region6: #{tpu_custom_call.1} parent=1 // pred_check
      _
    $region7: #{tpu_custom_call.1} parent=1 // pred_check_branch
      %22 = sbr.rel (0) target = $region9
    $region8: #{tpu_custom_call.1} parent=1 // pred_region
      %s24 = ssub.s32 2048, 2048
      %25 = vsyncadd [#allocation6], %s24
      %s26 = sshll.u32 [#allocation5], 4
      %s27 = int_to_ptr.vmem [resolvable:$true] %s26
      %32 = dma.hbm_to_vmem [thread:$0]  %s1, 2048, %s27, [#allocation6], 64, 64, 4
    $region9: #{tpu_custom_call.1} parent=1 // pred_fallthru
      _
    // Predicated region
    $region10: #{tpu_custom_call.1} parent=1 // pred_check
      _
    $region11: #{tpu_custom_call.1} parent=1 // pred_check_branch
      %34 = sbr.rel (0) target = $region13
    $region12: #{tpu_custom_call.1} parent=1 // pred_region
      _
    $region13: #{tpu_custom_call.1} parent=1 // pred_fallthru
      _
    // Predicated region
    $region14: #{tpu_custom_call.1} parent=1 // pred_check
      _
    $region15: #{tpu_custom_call.1} parent=1 // pred_check_branch
      %36 = sbr.rel (0) target = $region17
    $region16: #{tpu_custom_call.1} parent=1 // pred_region
      %37 = dma.done [#allocation3], 64
    $region17: #{tpu_custom_call.1} parent=1 // pred_fallthru
      _
    // Predicated region
    $region18: #{tpu_custom_call.1} parent=1 // pred_check
      _
    $region19: #{tpu_custom_call.1} parent=1 // pred_check_branch
      %39 = sbr.rel (0) target = $region21
    $region20: #{tpu_custom_call.1} parent=1 // pred_region
      %40 = dma.done [#allocation6], 2048
    $region21: #{tpu_custom_call.1} parent=1 // pred_fallthru
      _
    %v42 = vld [vmem:[#allocation2] sm:$0xf]
    %v43 = vld [vmem:[#allocation5] sm:$0xf]
    %v44 = vld [vmem:[#allocation5 + $0x4] sm:$0xf]
    %v45 = vld [vmem:[#allocation5 + $0x8] sm:$0xf]
    %v46 = vld [vmem:[#allocation5 + $0xc] sm:$0xf]
    %v47 = vld [vmem:[#allocation5 + $0x10] sm:$0xf]
    %v48 = vld [vmem:[#allocation5 + $0x14] sm:$0xf]
    %v49 = vld [vmem:[#allocation5 + $0x18] sm:$0xf]
    %v50 = vld [vmem:[#allocation5 + $0x1c] sm:$0xf]
    %v51 = vld [vmem:[#allocation5 + $0x20] sm:$0xf]
    %v52 = vld [vmem:[#allocation5 + $0x24] sm:$0xf]
    %v53 = vld [vmem:[#allocation5 + $0x28] sm:$0xf]
    %v54 = vld [vmem:[#allocation5 + $0x2c] sm:$0xf]
    %v55 = vld [vmem:[#allocation5 + $0x30] sm:$0xf]
    %v56 = vld [vmem:[#allocation5 + $0x34] sm:$0xf]
    %v57 = vld [vmem:[#allocation5 + $0x38] sm:$0xf]
    %v58 = vld [vmem:[#allocation5 + $0x3c] sm:$0xf]
    %v59 = vld [vmem:[#allocation5 + $0x40] sm:$0xf]
    %v60 = vld [vmem:[#allocation5 + $0x44] sm:$0xf]
    %v61 = vld [vmem:[#allocation5 + $0x48] sm:$0xf]
    %v62 = vld [vmem:[#allocation5 + $0x4c] sm:$0xf]
    %v63 = vld [vmem:[#allocation5 + $0x50] sm:$0xf]
    %v64 = vld [vmem:[#allocation5 + $0x54] sm:$0xf]
    %v65 = vld [vmem:[#allocation5 + $0x58] sm:$0xf]
    %v66 = vld [vmem:[#allocation5 + $0x5c] sm:$0xf]
    %v67 = vld [vmem:[#allocation5 + $0x60] sm:$0xf]
    %v68 = vld [vmem:[#allocation5 + $0x64] sm:$0xf]
    %v69 = vld [vmem:[#allocation5 + $0x68] sm:$0xf]
    %v70 = vld [vmem:[#allocation5 + $0x6c] sm:$0xf]
    %v71 = vld [vmem:[#allocation5 + $0x70] sm:$0xf]
    %v72 = vld [vmem:[#allocation5 + $0x74] sm:$0xf]
    %v73 = vld [vmem:[#allocation5 + $0x78] sm:$0xf]
    %v74 = vld [vmem:[#allocation5 + $0x7c] sm:$0xf]
    %v75 = vld [vmem:[%s2] sm:$0x3]
    %v77 = vlaneseq
    %v78 = vshrl.u32 %v77, 7
    %v79 = vsub.s32 0, %v78
    %v80 = vrot.slane %v75, %v79
    %v81 = vlaneseq
    %v82 = vshrl.u32 %v81, 7
    %v83 = vsub.s32 1, %v82
    %v84 = vrot.slane %v75, %v83
    %v119 = vunpack.c.l.b16 %v43
    %v120 = vunpack.c.l.b16 %v44
    %v121 = vunpack.c.l.b16 %v45
    %v122 = vunpack.c.l.b16 %v46
    %v123 = vunpack.c.l.b16 %v47
    %v124 = vunpack.c.l.b16 %v48
    %v125 = vunpack.c.l.b16 %v49
    %v126 = vunpack.c.l.b16 %v50
    %v127 = vunpack.c.l.b16 %v51
    %v128 = vunpack.c.l.b16 %v52
    %v129 = vunpack.c.l.b16 %v53
    %v130 = vunpack.c.l.b16 %v54
    %v131 = vunpack.c.l.b16 %v55
    %v132 = vunpack.c.l.b16 %v56
    %v133 = vunpack.c.l.b16 %v57
    %v134 = vunpack.c.l.b16 %v58
    %v135 = vunpack.c.l.b16 %v59
    %v136 = vunpack.c.l.b16 %v60
    %v137 = vunpack.c.l.b16 %v61
    %v138 = vunpack.c.l.b16 %v62
    %v139 = vunpack.c.l.b16 %v63
    %v140 = vunpack.c.l.b16 %v64
    %v141 = vunpack.c.l.b16 %v65
    %v142 = vunpack.c.l.b16 %v66
    %v143 = vunpack.c.l.b16 %v67
    %v144 = vunpack.c.l.b16 %v68
    %v145 = vunpack.c.l.b16 %v69
    %v146 = vunpack.c.l.b16 %v70
    %v147 = vunpack.c.l.b16 %v71
    %v148 = vunpack.c.l.b16 %v72
    %v149 = vunpack.c.l.b16 %v73
    %v150 = vunpack.c.l.b16 %v74
    %v151 = vpack.c.b16 %v120, %v119
    %v152 = vpack.c.b16 %v122, %v121
    %v153 = vpack.c.b16 %v124, %v123
    %v154 = vpack.c.b16 %v126, %v125
    %v155 = vpack.c.b16 %v128, %v127
    %v156 = vpack.c.b16 %v130, %v129
    %v157 = vpack.c.b16 %v132, %v131
    %v158 = vpack.c.b16 %v134, %v133
    %v159 = vpack.c.b16 %v136, %v135
    %v160 = vpack.c.b16 %v138, %v137
    %v161 = vpack.c.b16 %v140, %v139
    %v162 = vpack.c.b16 %v142, %v141
    %v163 = vpack.c.b16 %v144, %v143
    %v164 = vpack.c.b16 %v146, %v145
    %v165 = vpack.c.b16 %v148, %v147
    %v166 = vpack.c.b16 %v150, %v149
    %183 = vmatprep.subr.bf16.mxu0 0
    %184 = vmatpush1.bf16.xpose.msra.mxu0 %v158
    %185 = vmatprep.subr.bf16.mxu0 0
    %186 = vmatpush1.bf16.xpose.msra.mxu0 %v157
    %187 = vmatprep.subr.bf16.mxu0 0
    %188 = vmatpush1.bf16.xpose.msra.mxu0 %v156
    %189 = vmatprep.subr.bf16.mxu0 0
    %190 = vmatpush1.bf16.xpose.msra.mxu0 %v155
    %191 = vmatprep.subr.bf16.mxu0 0
    %192 = vmatpush1.bf16.xpose.msra.mxu0 %v154
    %193 = vmatprep.subr.bf16.mxu0 0
    %194 = vmatpush1.bf16.xpose.msra.mxu0 %v153
    %195 = vmatprep.subr.bf16.mxu0 0
    %196 = vmatpush1.bf16.xpose.msra.mxu0 %v152
    %197 = vmatprep.subr.bf16.mxu0 0
    %198 = vmatpush1.bf16.xpose.msra.mxu0 %v151
    %199 = vmatprep.subr.bf16.mxu0 0
    %200 = vmatpush2.bf16.xpose.msra.mxu0 %v166
    %201 = vmatprep.subr.bf16.mxu0 0
    %202 = vmatpush2.bf16.xpose.msra.mxu0 %v165
    %203 = vmatprep.subr.bf16.mxu0 0
    %204 = vmatpush2.bf16.xpose.msra.mxu0 %v164
    %205 = vmatprep.subr.bf16.mxu0 0
    %206 = vmatpush2.bf16.xpose.msra.mxu0 %v163
    %207 = vmatprep.subr.bf16.mxu0 0
    %208 = vmatpush2.bf16.xpose.msra.mxu0 %v162
    %209 = vmatprep.subr.bf16.mxu0 0
    %210 = vmatpush2.bf16.xpose.msra.mxu0 %v161
    %211 = vmatprep.subr.bf16.mxu0 0
    %212 = vmatpush2.bf16.xpose.msra.mxu0 %v160
    %213 = vmatprep.subr.bf16.mxu0 0
    %214 = vmatpush2.bf16.xpose.msra.mxu0 %v159
    %215 = vmatprep.mubr.bf16.mxu0 0
    %216 = vmatmul.mubr.bf16.gmra.mxu0 %v42
    %v217 = vpop.f32.mrf.mxu0
    %v218 = vadd.f32 %v80, %v217
    %v219 = vpop.f32.mrf.mxu0
    %v220 = vadd.f32 %v84, %v219
    %v221 = vpop.f32.mrf.mxu0
    %v222 = vpop.f32.mrf.mxu0
    %223 = vdwg.mxu0
    %224 = vst [vmem:[#allocation7] sm:$0xff] %v218
    %225 = vst [vmem:[#allocation7 + $0x8] sm:$0xff] %v220
    // Predicated region
    $region22: #{tpu_custom_call.1} parent=1 // pred_check
      _
    $region23: #{tpu_custom_call.1} parent=1 // pred_check_branch
      %227 = sbr.rel (0) target = $region25
    $region24: #{tpu_custom_call.1} parent=1 // pred_region
      %s229 = ssub.s32 256, 256
      %230 = vsyncadd [#allocation4], %s229
      %s232 = sshll.u32 [#allocation7], 4
      %s233 = int_to_ptr.vmem [resolvable:$true] %s232
      %235 = dma.vmem_to_hbm [thread:$0]  %s233, 256, %s3, [#allocation4]
    $region25: #{tpu_custom_call.1} parent=1 // pred_fallthru
      _
    // Predicated region
    $region26: #{tpu_custom_call.1} parent=1 // pred_check
      _
    $region27: #{tpu_custom_call.1} parent=1 // pred_check_branch
      %237 = sbr.rel (0) target = $region29
    $region28: #{tpu_custom_call.1} parent=1 // pred_region
      %238 = dma.done [#allocation4], 256
    $region29: #{tpu_custom_call.1} parent=1 // pred_fallthru
      _
    %239 = vsyncpa [#allocation3], 1
    %240 = vsyncpa [#allocation6], 1
    %241 = vsyncpa [#allocation4], 1

</llo_original>
